<compile_context>
chip_gen: v5e
topology: v5e:2x2
jax: 0.10.0
libtpu: 0.0.40
codegen_flags: <defaults>
</compile_context>

<pallas_src>
from functools import partial
from typing import NamedTuple

import numpy as np

import jax
import jax.numpy as jnp
from jax.experimental import pallas as pl
from jax.experimental.pallas import tpu as pltpu

NUM_KNOTS = 10
DEGREE = 3
NUM_BASIS = NUM_KNOTS - 1 - DEGREE  # 6


class KanParams(NamedTuple):
    layers: tuple          # per layer: (t0 (1,B*Fi), inv_d (DEGREE,B*Fi), w (B*Fi,Fo))
    in_features: int       # (padded) input feature width the kernel expects
    out_features: int      # true (unpadded) output width


def _round_up(x, m):
    return ((x + m - 1) // m) * m


def _cdiv(a, b):
    return (a + b - 1) // b


# ---------------------------------------------------------------------------
# Shared layer math (used inside the Pallas kernel AND by the JAX references).
# ---------------------------------------------------------------------------
def _kan_basis(x, t0, inv_d):
    """Clamped-ramp spline basis in the fused lane layout.

    x:      (N, Fi)             f32 activations
    t0:     (1, NUM_BASIS*Fi)   knots[b] per (b, fi) column (col = b*Fi + fi)
    inv_d:  (DEGREE, NUM_BASIS*Fi)  1/(knots[b+k]-knots[b]), k = 1..DEGREE
    returns (N, NUM_BASIS*Fi)
    """
    # Tile x once along lanes so every column of the slab is "its" x feature.
    xt = jnp.concatenate([x] * NUM_BASIS, axis=-1)          # (N, B*Fi)
    num = xt - t0                                            # hoisted over k
    basis = jnp.clip(num * inv_d[0:1, :], 0.0, 1.0)
    for k in range(1, DEGREE):
        basis = basis * jnp.clip(num * inv_d[k:k + 1, :], 0.0, 1.0)
    return basis


def _kan_layer_math(x, t0, inv_d, w):
    """One KAN layer: basis (N, B*Fi) @ w (B*Fi, Fo), f32 accumulation.

    The MXU dtype is whatever dtype `w` was prepared in (bf16 by default)."""
    basis = _kan_basis(x, t0, inv_d)
    return jnp.dot(basis.astype(w.dtype), w, preferred_element_type=jnp.float32)


# ---------------------------------------------------------------------------
# Pallas kernel (all layers fused; batch-tiled grid).
# ---------------------------------------------------------------------------
def _make_kan_kernel(num_layers):
    def kernel(*refs):
        x_ref, out_ref = refs[0], refs[-1]
        h = x_ref[...].astype(jnp.float32)
        for l in range(num_layers):
            t0 = refs[1 + 3 * l][...]
            inv_d = refs[2 + 3 * l][...]
            w = refs[3 + 3 * l][...]
            h = _kan_layer_math(h, t0, inv_d, w)
        out_ref[...] = h.astype(out_ref.dtype)
    return kernel


def _const_param_spec(shape, single_buffered):
    """Full-array parameter block; the block index never changes across grid
    steps so Pallas keeps it resident.  Buffered(1) drops the (useless) second
    pipeline buffer, halving the parameter VMEM footprint."""
    index_map = lambda i: (0,) * len(shape)
    if single_buffered:
        return pl.BlockSpec(shape, index_map, pipeline_mode=pl.Buffered(1))
    return pl.BlockSpec(shape, index_map)


def _vmem_capacity_bytes():
    try:
        return int(pltpu.get_tpu_info().vmem_capacity_bytes)
    except Exception:
        return 64 << 20  # conservative (v7x per-core VMEM)


def _choose_batch_tile(n8, vmem_cap):
    # Bigger tiles on 128-MiB-VMEM parts (v5e/v6e); keep >=2 grid steps when
    # the batch allows it so v7x's two TensorCores both get work.
    gen_cap = 1024 if vmem_cap >= (100 << 20) else 512
    min_steps = 2 if n8 >= 16 else 1
    steps = max(min_steps, _cdiv(n8, gen_cap))
    return _round_up(_cdiv(n8, steps), 8)


def _step_vmem_bytes(tile_n, in_features, fo_pad, layers):
    io = 2 * tile_n * (in_features + fo_pad) * 4            # double-buffered x/out tiles
    work = 0
    for t0, _, w in layers:
        bfi, fo = t0.shape[1], w.shape[1]
        # f32 basis slab + bf16 MXU copy + f32 layer output
        work = max(work, tile_n * (bfi * 6 + fo * 4))
    return io + work


@partial(jax.jit, static_argnames=("in_features", "out_features", "batch_tile",
                                   "vmem_cap", "single_buffer_params"))
def _kan_forward_impl(x, layers, *, in_features, out_features, batch_tile,
                      vmem_cap, single_buffer_params):
    n, f_in = x.shape
    num_layers = len(layers)
    fo_pad = layers[-1][2].shape[1]

    if f_in < in_features:                                   # feature padding (zeros)
        x = jnp.pad(x, ((0, 0), (0, in_features - f_in)))

    # --- batch tiling / padding ------------------------------------------------
    n8 = _round_up(max(n, 8), 8)
    tile_n = batch_tile if batch_tile is not None else _choose_batch_tile(n8, vmem_cap)
    tile_n = max(8, _round_up(tile_n, 8))

    # Explicit VMEM budget (v7x only has 64 MiB): shrink the batch tile if needed.
    param_bytes = sum(a.size * a.dtype.itemsize for layer in layers for a in layer)
    pbuf = 1 if single_buffer_params else 2
    while tile_n > 8 and (pbuf * param_bytes
                          + _step_vmem_bytes(tile_n, in_features, fo_pad, layers)
                          > 0.7 * vmem_cap):
        tile_n = max(8, _round_up(tile_n // 2, 8))

    n_pad = _round_up(n8, tile_n)
    if n_pad > n:                                            # ragged batch -> pad
        x = jnp.pad(x, ((0, n_pad - n), (0, 0)))

    vmem_limit = int(min(min(vmem_cap, 128 << 20),
                         max(1.5 * (2 * param_bytes +
                                    _step_vmem_bytes(tile_n, in_features, fo_pad, layers)),
                             32 << 20)))

    # --- specs -----------------------------------------------------------------
    in_specs = [pl.BlockSpec((tile_n, in_features), lambda i: (i, 0))]
    flat_params = []
    for t0, inv_d, w in layers:
        for p in (t0, inv_d, w):
            in_specs.append(_const_param_spec(p.shape, single_buffer_params))
            flat_params.append(p)

    out = pl.pallas_call(
        _make_kan_kernel(num_layers),
        out_shape=jax.ShapeDtypeStruct((n_pad, fo_pad), jnp.float32),
        grid_spec=pltpu.PrefetchScalarGridSpec(
            num_scalar_prefetch=0,
            grid=(n_pad // tile_n,),
            in_specs=in_specs,
            out_specs=pl.BlockSpec((tile_n, fo_pad), lambda i: (i, 0)),
        ),
        compiler_params=pltpu.CompilerParams(
            dimension_semantics=("parallel",),   # batch tiles are independent
            vmem_limit_bytes=vmem_limit,
        ),
    )(x, *flat_params)

    return out[:n, :out_features]


def kan_forward_pallas(x, params: KanParams, batch_tile=None):
    """Fused multi-layer KAN forward pass."""
    vmem_cap = _vmem_capacity_bytes()
    kwargs = dict(in_features=params.in_features, out_features=params.out_features,
                  batch_tile=batch_tile, vmem_cap=vmem_cap)
    try:
        return _kan_forward_impl(x, params.layers, single_buffer_params=True, **kwargs)
    except Exception:
        # TODO(synk): pl.Buffered(1) not supported by this jax version; fall back
        # to default double buffering for the (constant) parameter blocks.
        return _kan_forward_impl(x, params.layers, single_buffer_params=False, **kwargs)


# ---------------------------------------------------------------------------
# Parameter init (module-shaped) + host-side repack into the kernel layout.
# ---------------------------------------------------------------------------
def init_kan_params(key, layer_sizes):
    """Deterministic init mirroring the torch module: per-edge knots/coeffs."""
    params = []
    base_knots = jnp.linspace(-1.0, 1.0, NUM_KNOTS).astype(jnp.float32)
    for i in range(len(layer_sizes) - 1):
        fi, fo = layer_sizes[i], layer_sizes[i + 1]
        key, sub = jax.random.split(key)
        knots = jnp.broadcast_to(base_knots, (fo, fi, NUM_KNOTS)).astype(jnp.float32)
        coeffs = jax.random.normal(sub, (fo, fi, NUM_KNOTS), jnp.float32)
        params.append((knots, coeffs))
    return params


def prepare_kan_params(raw_params, mxu_dtype=jnp.bfloat16,
                       feature_multiple=1, last_out_multiple=128):
    """Repack (Fo, Fi, K) torch-shaped params into the kernel layout.

    Per layer (with Fi/Fo optionally zero-padded to `feature_multiple`, and the
    final Fo padded to `last_out_multiple` for a lane-dense output store):
      t0    (1, NUM_BASIS*Fi)        knots[b] per (b, fi) column
      inv_d (DEGREE, NUM_BASIS*Fi)   1/(knots[b+k]-knots[b]); 0 on padded cols
      w     (NUM_BASIS*Fi, Fo)       coeffs for the MXU contraction, cast to
                                     `mxu_dtype` on the host (pass jnp.float32
                                     for full-precision matmuls).
    """
    sizes = [raw_params[0][0].shape[1]] + [kn.shape[0] for kn, _ in raw_params]
    padded = [_round_up(s, max(1, feature_multiple)) for s in sizes]
    padded[-1] = _round_up(padded[-1], max(1, last_out_multiple))

    layers = []
    for l, (knots, coeffs) in enumerate(raw_params):
        fo, fi, _ = knots.shape
        fi_pad, fo_pad = padded[l], padded[l + 1]
        kn = np.asarray(knots, dtype=np.float32)
        co = np.asarray(coeffs, dtype=np.float32)
        # The MXU restructuring is only valid while knots are shared across Fo.
        assert np.all(kn == kn[:1]), (
            "prepare_kan_params: knots must be identical across out_features "
            "for the MXU-matmul formulation")
        kn0 = kn[0]                                           # (Fi, K)

        t0 = np.zeros((1, NUM_BASIS * fi_pad), np.float32)
        inv_d = np.zeros((DEGREE, NUM_BASIS * fi_pad), np.float32)
        w = np.zeros((NUM_BASIS * fi_pad, fo_pad), np.float32)
        for b in range(NUM_BASIS):
            cols = slice(b * fi_pad, b * fi_pad + fi)
            t0[0, cols] = kn0[:, b]
            for k in range(1, DEGREE + 1):
                d = kn0[:, b + k] - kn0[:, b]
                d_safe = np.where(np.abs(d) > 1e-12, d, 1.0)
                inv_d[k - 1, cols] = np.where(np.abs(d) > 1e-12, 1.0 / d_safe, 0.0)
            w[b * fi_pad:b * fi_pad + fi, :fo] = co[:, :, b].T

        layers.append((jnp.asarray(t0), jnp.asarray(inv_d),
                       jnp.asarray(w).astype(mxu_dtype)))
    return KanParams(layers=tuple(layers), in_features=padded[0],
                     out_features=sizes[-1])


# ---------------------------------------------------------------------------
# Pure-JAX references.
# ---------------------------------------------------------------------------
def kan_layer_ref(x, knots, coeffs):
    """Original-semantics layer (divides, (N,Fo,Fi) broadcast, sum over Fi)."""
    xb = x[:, None, :]
    acc = jnp.zeros((x.shape[0],) + knots.shape[:2], jnp.float32)
    for b in range(NUM_BASIS):
        t0 = knots[None, :, :, b]
        basis = jnp.ones_like(acc)
        for k in range(1, DEGREE + 1):
            basis = basis * jnp.clip(
                (xb - t0) / (knots[None, :, :, b + k] - t0), 0.0, 1.0)
        acc = acc + basis * coeffs[None, :, :, b]
    return jnp.sum(acc, axis=2)


def kan_forward_ref_original(x, raw_params):
    h = x
    for knots, coeffs in raw_params:
        h = kan_layer_ref(h, knots, coeffs)
    return h


def kan_forward_ref_restructured(x, params: KanParams):
    """Same math/layout as the kernel, executed by plain XLA."""
    n, f = x.shape
    if f < params.in_features:
        x = jnp.pad(x, ((0, 0), (0, params.in_features - f)))
    h = x.astype(jnp.float32)
    for t0, inv_d, w in params.layers:
        h = _kan_layer_math(h, t0, inv_d, w)
    return h[:, :params.out_features]


if __name__ == "__main__":
    key = jax.random.PRNGKey(0)
    kp, kx = jax.random.split(key)

    layer_sizes = [4, 16, 3]          # small KAN: 4 -> 16 -> 3
    batch = 8

    raw_params = init_kan_params(kp, layer_sizes)
    params_bf16 = prepare_kan_params(raw_params, mxu_dtype=jnp.bfloat16)
    params_f32 = prepare_kan_params(raw_params, mxu_dtype=jnp.float32)
    x = jax.random.uniform(kx, (batch, layer_sizes[0]), jnp.float32, -1.0, 1.0)

    # Fused Pallas kernel: bf16 MXU operands, f32 accumulation, f32 basis math.
    out = jax.block_until_ready(kan_forward_pallas(x, params_bf16))
    assert out.shape == (batch, layer_sizes[-1]), out.shape

    # (1) The restructured math (shared knots, reciprocal hoist, fused lane
    #     layout, matmul form, zero-padding) preserves the original module's
    #     forward semantics (exact f32 check).
    ref_orig = kan_forward_ref_original(x, raw_params)
    ref_exact = kan_forward_ref_restructured(x, params_f32)
    assert jnp.allclose(ref_exact, ref_orig, atol=1e-4, rtol=1e-4)

    # (2) The Pallas kernel matches the same restructured math executed by XLA
    #     with identical bf16 MXU rounding (loose bound absorbs the rare case
    #     where a 1-ulp inter-layer difference flips a bf16 rounding boundary).
    ref_match = kan_forward_ref_restructured(x, params_bf16)
    assert jnp.allclose(out, ref_match, atol=2e-2, rtol=2e-2)

    print("KERNEL_OK")
</pallas_src>

<mosaic_0001>
module attributes {stable_mosaic.version = 11 : i64} {
  func.func @kernel(%arg0: i32, %arg1: memref<8x4xf32, #tpu.memory_space<vmem>>, %arg2: memref<1x24xf32, #tpu.memory_space<vmem>>, %arg3: memref<3x24xf32, #tpu.memory_space<vmem>>, %arg4: memref<24x16xbf16, #tpu.memory_space<vmem>>, %arg5: memref<1x96xf32, #tpu.memory_space<vmem>>, %arg6: memref<3x96xf32, #tpu.memory_space<vmem>>, %arg7: memref<96x128xbf16, #tpu.memory_space<vmem>>, %arg8: memref<8x128xf32, #tpu.memory_space<vmem>>) attributes {dimension_semantics = [#tpu.dimension_semantics<parallel>], iteration_bounds = array<i64: 1>, scalar_prefetch = 0 : i64, scratch_operands = 0 : i64, tpu.core_type = #tpu.core_type<tc>, window_params = [{transform_indices = @transform_0, window_bounds = array<i64: 8, 4>}, {pipeline_mode = #tpu.pipeline_mode<synchronous>, transform_indices = @transform_1, window_bounds = array<i64: 1, 24>}, {pipeline_mode = #tpu.pipeline_mode<synchronous>, transform_indices = @transform_2, window_bounds = array<i64: 3, 24>}, {pipeline_mode = #tpu.pipeline_mode<synchronous>, transform_indices = @transform_3, window_bounds = array<i64: 24, 16>}, {pipeline_mode = #tpu.pipeline_mode<synchronous>, transform_indices = @transform_4, window_bounds = array<i64: 1, 96>}, {pipeline_mode = #tpu.pipeline_mode<synchronous>, transform_indices = @transform_5, window_bounds = array<i64: 3, 96>}, {pipeline_mode = #tpu.pipeline_mode<synchronous>, transform_indices = @transform_6, window_bounds = array<i64: 96, 128>}, {transform_indices = @transform_7, window_bounds = array<i64: 8, 128>}]} {
    %c0 = arith.constant 0 : index
    %c0_0 = arith.constant 0 : index
    %0 = vector.load %arg1[%c0, %c0_0] : memref<8x4xf32, #tpu.memory_space<vmem>>, vector<8x4xf32>
    %c0_1 = arith.constant 0 : index
    %c0_2 = arith.constant 0 : index
    %1 = vector.load %arg2[%c0_1, %c0_2] : memref<1x24xf32, #tpu.memory_space<vmem>>, vector<1x24xf32>
    %c0_3 = arith.constant 0 : index
    %c0_4 = arith.constant 0 : index
    %2 = vector.load %arg3[%c0_3, %c0_4] : memref<3x24xf32, #tpu.memory_space<vmem>>, vector<3x24xf32>
    %c0_5 = arith.constant 0 : index
    %c0_6 = arith.constant 0 : index
    %3 = vector.load %arg4[%c0_5, %c0_6] : memref<24x16xbf16, #tpu.memory_space<vmem>>, vector<24x16xbf16>
    %4 = tpu.concatenate %0, %0, %0, %0, %0, %0 in 1 : vector<8x4xf32>, vector<8x4xf32>, vector<8x4xf32>, vector<8x4xf32>, vector<8x4xf32>, vector<8x4xf32> -> vector<8x24xf32>
    %5 = vector.broadcast %1 : vector<1x24xf32> to vector<8x24xf32>
    %6 = arith.subf %4, %5 : vector<8x24xf32>
    %7 = vector.extract_strided_slice %2 {offsets = [0, 0], sizes = [1, 24], strides = [1, 1]} : vector<3x24xf32> to vector<1x24xf32>
    %8 = vector.broadcast %7 : vector<1x24xf32> to vector<8x24xf32>
    %9 = arith.mulf %6, %8 : vector<8x24xf32>
    %cst = arith.constant 0.000000e+00 : f32
    %cst_7 = arith.constant 1.000000e+00 : f32
    %10 = vector.broadcast %cst : f32 to vector<8x24xf32>
    %11 = arith.maximumf %10, %9 : vector<8x24xf32>
    %12 = vector.broadcast %cst_7 : f32 to vector<8x24xf32>
    %13 = arith.minimumf %12, %11 : vector<8x24xf32>
    %14 = vector.extract_strided_slice %2 {offsets = [1, 0], sizes = [1, 24], strides = [1, 1]} : vector<3x24xf32> to vector<1x24xf32>
    %15 = vector.broadcast %14 : vector<1x24xf32> to vector<8x24xf32>
    %16 = arith.mulf %6, %15 : vector<8x24xf32>
    %cst_8 = arith.constant 0.000000e+00 : f32
    %cst_9 = arith.constant 1.000000e+00 : f32
    %17 = vector.broadcast %cst_8 : f32 to vector<8x24xf32>
    %18 = arith.maximumf %17, %16 : vector<8x24xf32>
    %19 = vector.broadcast %cst_9 : f32 to vector<8x24xf32>
    %20 = arith.minimumf %19, %18 : vector<8x24xf32>
    %21 = arith.mulf %13, %20 : vector<8x24xf32>
    %22 = vector.extract_strided_slice %2 {offsets = [2, 0], sizes = [1, 24], strides = [1, 1]} : vector<3x24xf32> to vector<1x24xf32>
    %23 = vector.broadcast %22 : vector<1x24xf32> to vector<8x24xf32>
    %24 = arith.mulf %6, %23 : vector<8x24xf32>
    %cst_10 = arith.constant 0.000000e+00 : f32
    %cst_11 = arith.constant 1.000000e+00 : f32
    %25 = vector.broadcast %cst_10 : f32 to vector<8x24xf32>
    %26 = arith.maximumf %25, %24 : vector<8x24xf32>
    %27 = vector.broadcast %cst_11 : f32 to vector<8x24xf32>
    %28 = arith.minimumf %27, %26 : vector<8x24xf32>
    %29 = arith.mulf %21, %28 : vector<8x24xf32>
    %30 = arith.truncf %29 : vector<8x24xf32> to vector<8x24xbf16>
    %cst_12 = arith.constant dense<0.000000e+00> : vector<8x16xf32>
    %31 = tpu.matmul %30, %3, %cst_12 {dimension_numbers = #tpu.dot_dimension_numbers<[1], [0], [0], [1], [0, 0, 1, 1], [], []>} : vector<8x24xbf16>, vector<24x16xbf16>, vector<8x16xf32> -> vector<8x16xf32>
    %c0_13 = arith.constant 0 : index
    %c0_14 = arith.constant 0 : index
    %32 = vector.load %arg5[%c0_13, %c0_14] : memref<1x96xf32, #tpu.memory_space<vmem>>, vector<1x96xf32>
    %c0_15 = arith.constant 0 : index
    %c0_16 = arith.constant 0 : index
    %33 = vector.load %arg6[%c0_15, %c0_16] : memref<3x96xf32, #tpu.memory_space<vmem>>, vector<3x96xf32>
    %c0_17 = arith.constant 0 : index
    %c0_18 = arith.constant 0 : index
    %34 = vector.load %arg7[%c0_17, %c0_18] : memref<96x128xbf16, #tpu.memory_space<vmem>>, vector<96x128xbf16>
    %35 = tpu.concatenate %31, %31, %31, %31, %31, %31 in 1 : vector<8x16xf32>, vector<8x16xf32>, vector<8x16xf32>, vector<8x16xf32>, vector<8x16xf32>, vector<8x16xf32> -> vector<8x96xf32>
    %36 = vector.broadcast %32 : vector<1x96xf32> to vector<8x96xf32>
    %37 = arith.subf %35, %36 : vector<8x96xf32>
    %38 = vector.extract_strided_slice %33 {offsets = [0, 0], sizes = [1, 96], strides = [1, 1]} : vector<3x96xf32> to vector<1x96xf32>
    %39 = vector.broadcast %38 : vector<1x96xf32> to vector<8x96xf32>
    %40 = arith.mulf %37, %39 : vector<8x96xf32>
    %cst_19 = arith.constant 0.000000e+00 : f32
    %cst_20 = arith.constant 1.000000e+00 : f32
    %41 = vector.broadcast %cst_19 : f32 to vector<8x96xf32>
    %42 = arith.maximumf %41, %40 : vector<8x96xf32>
    %43 = vector.broadcast %cst_20 : f32 to vector<8x96xf32>
    %44 = arith.minimumf %43, %42 : vector<8x96xf32>
    %45 = vector.extract_strided_slice %33 {offsets = [1, 0], sizes = [1, 96], strides = [1, 1]} : vector<3x96xf32> to vector<1x96xf32>
    %46 = vector.broadcast %45 : vector<1x96xf32> to vector<8x96xf32>
    %47 = arith.mulf %37, %46 : vector<8x96xf32>
    %cst_21 = arith.constant 0.000000e+00 : f32
    %cst_22 = arith.constant 1.000000e+00 : f32
    %48 = vector.broadcast %cst_21 : f32 to vector<8x96xf32>
    %49 = arith.maximumf %48, %47 : vector<8x96xf32>
    %50 = vector.broadcast %cst_22 : f32 to vector<8x96xf32>
    %51 = arith.minimumf %50, %49 : vector<8x96xf32>
    %52 = arith.mulf %44, %51 : vector<8x96xf32>
    %53 = vector.extract_strided_slice %33 {offsets = [2, 0], sizes = [1, 96], strides = [1, 1]} : vector<3x96xf32> to vector<1x96xf32>
    %54 = vector.broadcast %53 : vector<1x96xf32> to vector<8x96xf32>
    %55 = arith.mulf %37, %54 : vector<8x96xf32>
    %cst_23 = arith.constant 0.000000e+00 : f32
    %cst_24 = arith.constant 1.000000e+00 : f32
    %56 = vector.broadcast %cst_23 : f32 to vector<8x96xf32>
    %57 = arith.maximumf %56, %55 : vector<8x96xf32>
    %58 = vector.broadcast %cst_24 : f32 to vector<8x96xf32>
    %59 = arith.minimumf %58, %57 : vector<8x96xf32>
    %60 = arith.mulf %52, %59 : vector<8x96xf32>
    %61 = arith.truncf %60 : vector<8x96xf32> to vector<8x96xbf16>
    %cst_25 = arith.constant dense<0.000000e+00> : vector<8x128xf32>
    %62 = tpu.matmul %61, %34, %cst_25 {dimension_numbers = #tpu.dot_dimension_numbers<[1], [0], [0], [1], [0, 0, 1, 1], [], []>} : vector<8x96xbf16>, vector<96x128xbf16>, vector<8x128xf32> -> vector<8x128xf32>
    %c0_26 = arith.constant 0 : index
    %c0_27 = arith.constant 0 : index
    %63 = vector.load %arg8[%c0_26, %c0_27] : memref<8x128xf32, #tpu.memory_space<vmem>>, vector<8x128xf32>
    tpu.vector_store %arg8[%c0_26, %c0_27], %62 {strides = array<i32>} : memref<8x128xf32, #tpu.memory_space<vmem>>, vector<8x128xf32>,
    return
  }
  func.func @transform_0(%arg0: i32) -> (i32, i32) {
    %c0_i32 = arith.constant 0 : i32
    %c0_i32_0 = arith.constant 0 : i32
    return %arg0, %c0_i32 : i32, i32
  }
  func.func @transform_1(%arg0: i32) -> (i32, i32) {
    %c0_i32 = arith.constant 0 : i32
    %c0_i32_0 = arith.constant 0 : i32
    %c0_i32_1 = arith.constant 0 : i32
    return %c0_i32, %c0_i32_0 : i32, i32
  }
  func.func @transform_2(%arg0: i32) -> (i32, i32) {
    %c0_i32 = arith.constant 0 : i32
    %c0_i32_0 = arith.constant 0 : i32
    %c0_i32_1 = arith.constant 0 : i32
    return %c0_i32, %c0_i32_0 : i32, i32
  }
  func.func @transform_3(%arg0: i32) -> (i32, i32) {
    %c0_i32 = arith.constant 0 : i32
    %c0_i32_0 = arith.constant 0 : i32
    %c0_i32_1 = arith.constant 0 : i32
    return %c0_i32, %c0_i32_0 : i32, i32
  }
  func.func @transform_4(%arg0: i32) -> (i32, i32) {
    %c0_i32 = arith.constant 0 : i32
    %c0_i32_0 = arith.constant 0 : i32
    %c0_i32_1 = arith.constant 0 : i32
    return %c0_i32, %c0_i32_0 : i32, i32
  }
  func.func @transform_5(%arg0: i32) -> (i32, i32) {
    %c0_i32 = arith.constant 0 : i32
    %c0_i32_0 = arith.constant 0 : i32
    %c0_i32_1 = arith.constant 0 : i32
    return %c0_i32, %c0_i32_0 : i32, i32
  }
  func.func @transform_6(%arg0: i32) -> (i32, i32) {
    %c0_i32 = arith.constant 0 : i32
    %c0_i32_0 = arith.constant 0 : i32
    %c0_i32_1 = arith.constant 0 : i32
    return %c0_i32, %c0_i32_0 : i32, i32
  }
  func.func @transform_7(%arg0: i32) -> (i32, i32) {
    %c0_i32 = arith.constant 0 : i32
    %c0_i32_0 = arith.constant 0 : i32
    return %arg0, %c0_i32 : i32, i32
  }
}

module attributes {stable_mosaic.version = 11 : i64} {
  func.func @kernel(%arg0: i32, %arg1: memref<8x4xf32, #tpu.memory_space<vmem>>, %arg2: memref<1x24xf32, #tpu.memory_space<vmem>>, %arg3: memref<3x24xf32, #tpu.memory_space<vmem>>, %arg4: memref<24x16xbf16, #tpu.memory_space<vmem>>, %arg5: memref<1x96xf32, #tpu.memory_space<vmem>>, %arg6: memref<3x96xf32, #tpu.memory_space<vmem>>, %arg7: memref<96x128xbf16, #tpu.memory_space<vmem>>, %arg8: memref<8x128xf32, #tpu.memory_space<vmem>>) attributes {dimension_semantics = [#tpu.dimension_semantics<parallel>], iteration_bounds = array<i64: 1>, scalar_prefetch = 0 : i64, scratch_operands = 0 : i64, tpu.core_type = #tpu.core_type<tc>, window_params = [{transform_indices = @transform_0, window_bounds = array<i64: 8, 4>}, {pipeline_mode = #tpu.pipeline_mode<synchronous>, transform_indices = @transform_1, window_bounds = array<i64: 1, 24>}, {pipeline_mode = #tpu.pipeline_mode<synchronous>, transform_indices = @transform_2, window_bounds = array<i64: 3, 24>}, {pipeline_mode = #tpu.pipeline_mode<synchronous>, transform_indices = @transform_3, window_bounds = array<i64: 24, 16>}, {pipeline_mode = #tpu.pipeline_mode<synchronous>, transform_indices = @transform_4, window_bounds = array<i64: 1, 96>}, {pipeline_mode = #tpu.pipeline_mode<synchronous>, transform_indices = @transform_5, window_bounds = array<i64: 3, 96>}, {pipeline_mode = #tpu.pipeline_mode<synchronous>, transform_indices = @transform_6, window_bounds = array<i64: 96, 128>}, {transform_indices = @transform_7, window_bounds = array<i64: 8, 128>}]} {
    %c0 = arith.constant 0 : index
    %c0_0 = arith.constant 0 : index
    %0 = vector.load %arg1[%c0, %c0_0] : memref<8x4xf32, #tpu.memory_space<vmem>>, vector<8x4xf32>
    %c0_1 = arith.constant 0 : index
    %c0_2 = arith.constant 0 : index
    %1 = vector.load %arg2[%c0_1, %c0_2] : memref<1x24xf32, #tpu.memory_space<vmem>>, vector<1x24xf32>
    %c0_3 = arith.constant 0 : index
    %c0_4 = arith.constant 0 : index
    %2 = vector.load %arg3[%c0_3, %c0_4] : memref<3x24xf32, #tpu.memory_space<vmem>>, vector<3x24xf32>
    %c0_5 = arith.constant 0 : index
    %c0_6 = arith.constant 0 : index
    %3 = vector.load %arg4[%c0_5, %c0_6] : memref<24x16xbf16, #tpu.memory_space<vmem>>, vector<24x16xbf16>
    %4 = tpu.concatenate %0, %0, %0, %0, %0, %0 in 1 : vector<8x4xf32>, vector<8x4xf32>, vector<8x4xf32>, vector<8x4xf32>, vector<8x4xf32>, vector<8x4xf32> -> vector<8x24xf32>
    %5 = vector.broadcast %1 : vector<1x24xf32> to vector<8x24xf32>
    %6 = arith.subf %4, %5 : vector<8x24xf32>
    %7 = vector.extract_strided_slice %2 {offsets = [0, 0], sizes = [1, 24], strides = [1, 1]} : vector<3x24xf32> to vector<1x24xf32>
    %8 = vector.broadcast %7 : vector<1x24xf32> to vector<8x24xf32>
    %9 = arith.mulf %6, %8 : vector<8x24xf32>
    %cst = arith.constant 0.000000e+00 : f32
    %cst_7 = arith.constant 1.000000e+00 : f32
    %10 = vector.broadcast %cst : f32 to vector<8x24xf32>
    %11 = arith.maximumf %10, %9 : vector<8x24xf32>
    %12 = vector.broadcast %cst_7 : f32 to vector<8x24xf32>
    %13 = arith.minimumf %12, %11 : vector<8x24xf32>
    %14 = vector.extract_strided_slice %2 {offsets = [1, 0], sizes = [1, 24], strides = [1, 1]} : vector<3x24xf32> to vector<1x24xf32>
    %15 = vector.broadcast %14 : vector<1x24xf32> to vector<8x24xf32>
    %16 = arith.mulf %6, %15 : vector<8x24xf32>
    %cst_8 = arith.constant 0.000000e+00 : f32
    %cst_9 = arith.constant 1.000000e+00 : f32
    %17 = vector.broadcast %cst_8 : f32 to vector<8x24xf32>
    %18 = arith.maximumf %17, %16 : vector<8x24xf32>
    %19 = vector.broadcast %cst_9 : f32 to vector<8x24xf32>
    %20 = arith.minimumf %19, %18 : vector<8x24xf32>
    %21 = arith.mulf %13, %20 : vector<8x24xf32>
    %22 = vector.extract_strided_slice %2 {offsets = [2, 0], sizes = [1, 24], strides = [1, 1]} : vector<3x24xf32> to vector<1x24xf32>
    %23 = vector.broadcast %22 : vector<1x24xf32> to vector<8x24xf32>
    %24 = arith.mulf %6, %23 : vector<8x24xf32>
    %cst_10 = arith.constant 0.000000e+00 : f32
    %cst_11 = arith.constant 1.000000e+00 : f32
    %25 = vector.broadcast %cst_10 : f32 to vector<8x24xf32>
    %26 = arith.maximumf %25, %24 : vector<8x24xf32>
    %27 = vector.broadcast %cst_11 : f32 to vector<8x24xf32>
    %28 = arith.minimumf %27, %26 : vector<8x24xf32>
    %29 = arith.mulf %21, %28 : vector<8x24xf32>
    %30 = arith.truncf %29 : vector<8x24xf32> to vector<8x24xbf16>
    %cst_12 = arith.constant dense<0.000000e+00> : vector<8x16xf32>
    %31 = tpu.matmul %30, %3, %cst_12 {dimension_numbers = #tpu.dot_dimension_numbers<[1], [0], [0], [1], [0, 0, 1, 1], [], []>} : vector<8x24xbf16>, vector<24x16xbf16>, vector<8x16xf32> -> vector<8x16xf32>
    %c0_13 = arith.constant 0 : index
    %c0_14 = arith.constant 0 : index
    %32 = vector.load %arg5[%c0_13, %c0_14] : memref<1x96xf32, #tpu.memory_space<vmem>>, vector<1x96xf32>
    %c0_15 = arith.constant 0 : index
    %c0_16 = arith.constant 0 : index
    %33 = vector.load %arg6[%c0_15, %c0_16] : memref<3x96xf32, #tpu.memory_space<vmem>>, vector<3x96xf32>
    %c0_17 = arith.constant 0 : index
    %c0_18 = arith.constant 0 : index
    %34 = vector.load %arg7[%c0_17, %c0_18] : memref<96x128xbf16, #tpu.memory_space<vmem>>, vector<96x128xbf16>
    %35 = tpu.concatenate %31, %31, %31, %31, %31, %31 in 1 : vector<8x16xf32>, vector<8x16xf32>, vector<8x16xf32>, vector<8x16xf32>, vector<8x16xf32>, vector<8x16xf32> -> vector<8x96xf32>
    %36 = vector.broadcast %32 : vector<1x96xf32> to vector<8x96xf32>
    %37 = arith.subf %35, %36 : vector<8x96xf32>
    %38 = vector.extract_strided_slice %33 {offsets = [0, 0], sizes = [1, 96], strides = [1, 1]} : vector<3x96xf32> to vector<1x96xf32>
    %39 = vector.broadcast %38 : vector<1x96xf32> to vector<8x96xf32>
    %40 = arith.mulf %37, %39 : vector<8x96xf32>
    %cst_19 = arith.constant 0.000000e+00 : f32
    %cst_20 = arith.constant 1.000000e+00 : f32
    %41 = vector.broadcast %cst_19 : f32 to vector<8x96xf32>
    %42 = arith.maximumf %41, %40 : vector<8x96xf32>
    %43 = vector.broadcast %cst_20 : f32 to vector<8x96xf32>
    %44 = arith.minimumf %43, %42 : vector<8x96xf32>
    %45 = vector.extract_strided_slice %33 {offsets = [1, 0], sizes = [1, 96], strides = [1, 1]} : vector<3x96xf32> to vector<1x96xf32>
    %46 = vector.broadcast %45 : vector<1x96xf32> to vector<8x96xf32>
    %47 = arith.mulf %37, %46 : vector<8x96xf32>
    %cst_21 = arith.constant 0.000000e+00 : f32
    %cst_22 = arith.constant 1.000000e+00 : f32
    %48 = vector.broadcast %cst_21 : f32 to vector<8x96xf32>
    %49 = arith.maximumf %48, %47 : vector<8x96xf32>
    %50 = vector.broadcast %cst_22 : f32 to vector<8x96xf32>
    %51 = arith.minimumf %50, %49 : vector<8x96xf32>
    %52 = arith.mulf %44, %51 : vector<8x96xf32>
    %53 = vector.extract_strided_slice %33 {offsets = [2, 0], sizes = [1, 96], strides = [1, 1]} : vector<3x96xf32> to vector<1x96xf32>
    %54 = vector.broadcast %53 : vector<1x96xf32> to vector<8x96xf32>
    %55 = arith.mulf %37, %54 : vector<8x96xf32>
    %cst_23 = arith.constant 0.000000e+00 : f32
    %cst_24 = arith.constant 1.000000e+00 : f32
    %56 = vector.broadcast %cst_23 : f32 to vector<8x96xf32>
    %57 = arith.maximumf %56, %55 : vector<8x96xf32>
    %58 = vector.broadcast %cst_24 : f32 to vector<8x96xf32>
    %59 = arith.minimumf %58, %57 : vector<8x96xf32>
    %60 = arith.mulf %52, %59 : vector<8x96xf32>
    %61 = arith.truncf %60 : vector<8x96xf32> to vector<8x96xbf16>
    %cst_25 = arith.constant dense<0.000000e+00> : vector<8x128xf32>
    %62 = tpu.matmul %61, %34, %cst_25 {dimension_numbers = #tpu.dot_dimension_numbers<[1], [0], [0], [1], [0, 0, 1, 1], [], []>} : vector<8x96xbf16>, vector<96x128xbf16>, vector<8x128xf32> -> vector<8x128xf32>
    %c0_26 = arith.constant 0 : index
    %c0_27 = arith.constant 0 : index
    %63 = vector.load %arg8[%c0_26, %c0_27] : memref<8x128xf32, #tpu.memory_space<vmem>>, vector<8x128xf32>
    tpu.vector_store %arg8[%c0_26, %c0_27], %62 {strides = array<i32>} : memref<8x128xf32, #tpu.memory_space<vmem>>, vector<8x128xf32>,
    return
  }
  func.func @transform_0(%arg0: i32) -> (i32, i32) {
    %c0_i32 = arith.constant 0 : i32
    %c0_i32_0 = arith.constant 0 : i32
    return %arg0, %c0_i32 : i32, i32
  }
  func.func @transform_1(%arg0: i32) -> (i32, i32) {
    %c0_i32 = arith.constant 0 : i32
    %c0_i32_0 = arith.constant 0 : i32
    %c0_i32_1 = arith.constant 0 : i32
    return %c0_i32, %c0_i32_0 : i32, i32
  }
  func.func @transform_2(%arg0: i32) -> (i32, i32) {
    %c0_i32 = arith.constant 0 : i32
    %c0_i32_0 = arith.constant 0 : i32
    %c0_i32_1 = arith.constant 0 : i32
    return %c0_i32, %c0_i32_0 : i32, i32
  }
  func.func @transform_3(%arg0: i32) -> (i32, i32) {
    %c0_i32 = arith.constant 0 : i32
    %c0_i32_0 = arith.constant 0 : i32
    %c0_i32_1 = arith.constant 0 : i32
    return %c0_i32, %c0_i32_0 : i32, i32
  }
  func.func @transform_4(%arg0: i32) -> (i32, i32) {
    %c0_i32 = arith.constant 0 : i32
    %c0_i32_0 = arith.constant 0 : i32
    %c0_i32_1 = arith.constant 0 : i32
    return %c0_i32, %c0_i32_0 : i32, i32
  }
  func.func @transform_5(%arg0: i32) -> (i32, i32) {
    %c0_i32 = arith.constant 0 : i32
    %c0_i32_0 = arith.constant 0 : i32
    %c0_i32_1 = arith.constant 0 : i32
    return %c0_i32, %c0_i32_0 : i32, i32
  }
  func.func @transform_6(%arg0: i32) -> (i32, i32) {
    %c0_i32 = arith.constant 0 : i32
    %c0_i32_0 = arith.constant 0 : i32
    %c0_i32_1 = arith.constant 0 : i32
    return %c0_i32, %c0_i32_0 : i32, i32
  }
  func.func @transform_7(%arg0: i32) -> (i32, i32) {
    %c0_i32 = arith.constant 0 : i32
    %c0_i32_0 = arith.constant 0 : i32
    return %arg0, %c0_i32 : i32, i32
  }
}

</mosaic_0001>

<llo_original>
// kernel: _kan_forward_impl.1
$region0: #{_kan_forward_impl.1}
  #allocation0 [shape = 'u32[]', space=smem, size = 0x4, offset = 0x4, fixed_abs, tag = 'smem constant byte address 0x4 - core index']
  #allocation1 [shape = 'u32[72,128]{1,0:T(1,128)}', space=vmem, size = 0x9000, scoped, tag = 'internal scratch']
  %s0 = inlined_call_operand.vmem [shape: f32[8,4], index: 0, kind: input, shape index: {}]
  %s1 = inlined_call_operand.vmem [shape: f32[1,24], index: 1, kind: input, shape index: {}]
  %s2 = inlined_call_operand.vmem [shape: f32[3,24], index: 2, kind: input, shape index: {}]
  %s3 = inlined_call_operand.vmem [shape: bf16[24,16], index: 3, kind: input, shape index: {}]
  %s4 = inlined_call_operand.vmem [shape: f32[1,96], index: 4, kind: input, shape index: {}]
  %s5 = inlined_call_operand.vmem [shape: f32[3,96], index: 5, kind: input, shape index: {}]
  %s6 = inlined_call_operand.hbm [shape: bf16[96,128], index: 6, kind: input, shape index: {}]
  %s7 = inlined_call_operand.vmem [shape: f32[8,128], index: 7, kind: output, shape index: {}]
  %s8 = sld [smem:[#allocation0]]
  $region42: #{_kan_forward_impl.1} parent=0
    _
  %s10 = ssub.s32 1, %s8
  %s11 = scalar_select 0, %s10, %s8
  $region1: #{_kan_forward_impl.1} parent=0
    #allocation2 [shape = 'u8[24576]{0}', space=vmem, size = 0x6000, scoped, tag = 'input window, operand 6, single buffered']
    #allocation3 [shape = 's32[1]{0}', space=sflag, size = 0x4, scoped, tag = 'scoped memory for _kan_forward_impl.1']
    %12 = vsyncpa [#allocation3], 0
    // Predicated region
    $region2: #{_kan_forward_impl.1} parent=1 // pred_check
      _
    $region3: #{_kan_forward_impl.1} parent=1 // pred_check_branch
      %14 = sbr.rel (0) target = $region5
    $region4: #{_kan_forward_impl.1} parent=1 // pred_region
      _
    $region5: #{_kan_forward_impl.1} parent=1 // pred_fallthru
      _
    // Predicated region
    $region6: #{_kan_forward_impl.1} parent=1 // pred_check
      _
    $region7: #{_kan_forward_impl.1} parent=1 // pred_check_branch
      %16 = sbr.rel (0) target = $region9
    $region8: #{_kan_forward_impl.1} parent=1 // pred_region
      _
    $region9: #{_kan_forward_impl.1} parent=1 // pred_fallthru
      _
    // Predicated region
    $region10: #{_kan_forward_impl.1} parent=1 // pred_check
      _
    $region11: #{_kan_forward_impl.1} parent=1 // pred_check_branch
      %18 = sbr.rel (0) target = $region13
    $region12: #{_kan_forward_impl.1} parent=1 // pred_region
      _
    $region13: #{_kan_forward_impl.1} parent=1 // pred_fallthru
      _
    // Predicated region
    $region14: #{_kan_forward_impl.1} parent=1 // pred_check
      _
    $region15: #{_kan_forward_impl.1} parent=1 // pred_check_branch
      %20 = sbr.rel (0) target = $region17
    $region16: #{_kan_forward_impl.1} parent=1 // pred_region
      _
    $region17: #{_kan_forward_impl.1} parent=1 // pred_fallthru
      _
    // Predicated region
    $region18: #{_kan_forward_impl.1} parent=1 // pred_check
      _
    $region19: #{_kan_forward_impl.1} parent=1 // pred_check_branch
      %22 = sbr.rel (0) target = $region21
    $region20: #{_kan_forward_impl.1} parent=1 // pred_region
      _
    $region21: #{_kan_forward_impl.1} parent=1 // pred_fallthru
      _
    // Predicated region
    $region22: #{_kan_forward_impl.1} parent=1 // pred_check
      _
    $region23: #{_kan_forward_impl.1} parent=1 // pred_check_branch
      %24 = sbr.rel (0) target = $region25
    $region24: #{_kan_forward_impl.1} parent=1 // pred_region
      _
    $region25: #{_kan_forward_impl.1} parent=1 // pred_fallthru
      _
    // Predicated region
    $region26: #{_kan_forward_impl.1} parent=1 // pred_check
      _
    $region27: #{_kan_forward_impl.1} parent=1 // pred_check_branch
      %26 = sbr.rel (0) target = $region29
    $region28: #{_kan_forward_impl.1} parent=1 // pred_region
      %28 = vsyncadd [#allocation3], 0
      %s29 = sshll.u32 %s6, 4
      %s30 = int_to_ptr.hbm [resolvable:$true] %s29
      %s31 = sshll.u32 [#allocation2], 4
      %s32 = int_to_ptr.vmem [resolvable:$true] %s31
      %37 = dma.hbm_to_vmem [thread:$0]  %s30, 768, %s32, [#allocation3], 64, 64, 4
    $region29: #{_kan_forward_impl.1} parent=1 // pred_fallthru
      _
    // Predicated region
    $region30: #{_kan_forward_impl.1} parent=1 // pred_check
      _
    $region31: #{_kan_forward_impl.1} parent=1 // pred_check_branch
      %39 = sbr.rel (0) target = $region33
    $region32: #{_kan_forward_impl.1} parent=1 // pred_region
      %41 = dma.done [#allocation3], 768
    $region33: #{_kan_forward_impl.1} parent=1 // pred_fallthru
      _
    %v43 = vld [vmem:[%s0] sm:$0xff]
    %v44 = vld [vmem:[%s1] sm:$0x1]
    %v45 = vld [vmem:[%s2] sm:$0x7]
    %v46 = vld [vmem:[%s3] sm:$0xf]
    %v47 = vld [vmem:[%s3 + $0x4] sm:$0xf]
    %v48 = vld [vmem:[%s3 + $0x8] sm:$0xf]
    %50 = vrot.lane.b32.xlu0 %v43, 4
    %v51 = vpop.permute.xlu0 %50
    %53 = vrot.lane.b32.xlu0 %v43, 8
    %v54 = vpop.permute.xlu0 %53
    %56 = vrot.lane.b32.xlu0 %v43, 12
    %v57 = vpop.permute.xlu0 %56
    %59 = vrot.lane.b32.xlu0 %v43, 16
    %v60 = vpop.permute.xlu0 %59
    %62 = vrot.lane.b32.xlu0 %v43, 20
    %v63 = vpop.permute.xlu0 %62
    %vm65 = vcmask 31744
    %v66 = vsel %vm65, %v43, %v51
    %vm67 = vcmask 64512
    %v68 = vsel %vm67, %v66, %v54
    %vm69 = vcmask 97280
    %v70 = vsel %vm69, %v68, %v57
    %vm71 = vcmask 130048
    %v72 = vsel %vm71, %v70, %v60
    %vm73 = vcmask 162816
    %v74 = vsel %vm73, %v72, %v63
    %v76 = vperm.slane %v44, 0
    %v78 = vsub.f32 %v74, %v76
    %v79 = vperm.slane %v45, 0
    %v80 = vmul.f32 %v78, %v79
    %v81 = vmax.f32 %v80, 0.0
    %v82 = vmin.f32 %v81, 1.0
    %v83 = vperm.slane %v45, 1
    %v84 = vmul.f32 %v78, %v83
    %v85 = vmax.f32 %v84, 0.0
    %v86 = vmin.f32 %v85, 1.0
    %v87 = vmul.f32 %v82, %v86
    %v88 = vperm.slane %v45, 2
    %v89 = vmul.f32 %v78, %v88
    %v90 = vmax.f32 %v89, 0.0
    %v91 = vmin.f32 %v90, 1.0
    %v92 = vmul.f32 %v87, %v91
    %v93 = vpack.c.bf16 %v92, %v92
    %v97 = vunpack.c.l.b16 %v46
    %v98 = vunpack.c.l.b16 %v47
    %v99 = vunpack.c.l.b16 %v48
    %v100 = vpack.c.b16 %v98, %v97
    %v101 = vpack.c.b16 %v99, %v99
    %vm103 = vcmask 195584
    %v105 = vsel %vm103, %v93, 0
    %vm107 = vcmask 1043456
    %v109 = vsel %vm107, %v101, 0
    %111 = vmatpush.bf16.msra.mxu0 0
    %112 = vmatpush.bf16.msra.mxu0 0
    %113 = vmatpush.bf16.msra.mxu0 0
    %114 = vmatpush.bf16.msra.mxu0 0
    %115 = vmatpush.bf16.msra.mxu0 0
    %116 = vmatpush.bf16.msra.mxu0 0
    %117 = vmatpush.bf16.msra.mxu0 %v109
    %118 = vmatpush.bf16.msra.mxu0 %v100
    %119 = vmatmul.bf16.gmra.mxu0 %v105
    %v120 = vpop.f32.mrf.mxu0
    %v121 = vadd.f32 0.0, %v120
    %v122 = vpop.f32.mrf.mxu0
    %123 = vdwg.mxu0
    %v124 = vld [vmem:[%s4] sm:$0x1]
    %v125 = vld [vmem:[%s5] sm:$0x7]
    %v126 = vld [vmem:[#allocation2] sm:$0xf]
    %v127 = vld [vmem:[#allocation2 + $0x4] sm:$0xf]
    %v128 = vld [vmem:[#allocation2 + $0x8] sm:$0xf]
    %v129 = vld [vmem:[#allocation2 + $0xc] sm:$0xf]
    %v130 = vld [vmem:[#allocation2 + $0x10] sm:$0xf]
    %v131 = vld [vmem:[#allocation2 + $0x14] sm:$0xf]
    %v132 = vld [vmem:[#allocation2 + $0x18] sm:$0xf]
    %v133 = vld [vmem:[#allocation2 + $0x1c] sm:$0xf]
    %v134 = vld [vmem:[#allocation2 + $0x20] sm:$0xf]
    %v135 = vld [vmem:[#allocation2 + $0x24] sm:$0xf]
    %v136 = vld [vmem:[#allocation2 + $0x28] sm:$0xf]
    %v137 = vld [vmem:[#allocation2 + $0x2c] sm:$0xf]
    %139 = vrot.lane.b32.xlu0 %v121, 16
    %v140 = vpop.permute.xlu0 %139
    %142 = vrot.lane.b32.xlu0 %v121, 32
    %v143 = vpop.permute.xlu0 %142
    %145 = vrot.lane.b32.xlu0 %v121, 48
    %v146 = vpop.permute.xlu0 %145
    %148 = vrot.lane.b32.xlu0 %v121, 64
    %v149 = vpop.permute.xlu0 %148
    %151 = vrot.lane.b32.xlu0 %v121, 80
    %v152 = vpop.permute.xlu0 %151
    %v154 = vsel %vm71, %v121, %v140
    %vm155 = vcmask 261120
    %v156 = vsel %vm155, %v154, %v143
    %vm157 = vcmask 392192
    %v158 = vsel %vm157, %v156, %v146
    %vm159 = vcmask 523264
    %v160 = vsel %vm159, %v158, %v149
    %vm161 = vcmask 654336
    %v162 = vsel %vm161, %v160, %v152
    %v164 = vperm.slane %v124, 0
    %v166 = vsub.f32 %v162, %v164
    %v167 = vperm.slane %v125, 0
    %v168 = vmul.f32 %v166, %v167
    %v169 = vmax.f32 %v168, 0.0
    %v170 = vmin.f32 %v169, 1.0
    %v171 = vperm.slane %v125, 1
    %v172 = vmul.f32 %v166, %v171
    %v173 = vmax.f32 %v172, 0.0
    %v174 = vmin.f32 %v173, 1.0
    %v175 = vmul.f32 %v170, %v174
    %v176 = vperm.slane %v125, 2
    %v177 = vmul.f32 %v166, %v176
    %v178 = vmax.f32 %v177, 0.0
    %v179 = vmin.f32 %v178, 1.0
    %v180 = vmul.f32 %v175, %v179
    %v181 = vpack.c.bf16 %v180, %v180
    %v194 = vunpack.c.l.b16 %v126
    %v195 = vunpack.c.l.b16 %v127
    %v196 = vunpack.c.l.b16 %v128
    %v197 = vunpack.c.l.b16 %v129
    %v198 = vunpack.c.l.b16 %v130
    %v199 = vunpack.c.l.b16 %v131
    %v200 = vunpack.c.l.b16 %v132
    %v201 = vunpack.c.l.b16 %v133
    %v202 = vunpack.c.l.b16 %v134
    %v203 = vunpack.c.l.b16 %v135
    %v204 = vunpack.c.l.b16 %v136
    %v205 = vunpack.c.l.b16 %v137
    %v206 = vpack.c.b16 %v195, %v194
    %v207 = vpack.c.b16 %v197, %v196
    %v208 = vpack.c.b16 %v199, %v198
    %v209 = vpack.c.b16 %v201, %v200
    %v210 = vpack.c.b16 %v203, %v202
    %v211 = vpack.c.b16 %v205, %v204
    %vm218 = vcmask 785408
    %v220 = vsel %vm218, %v181, 0
    %222 = vmatpush.bf16.msra.mxu0 0
    %223 = vmatpush.bf16.msra.mxu0 0
    %224 = vmatpush.bf16.msra.mxu0 %v211
    %225 = vmatpush.bf16.msra.mxu0 %v210
    %226 = vmatpush.bf16.msra.mxu0 %v209
    %227 = vmatpush.bf16.msra.mxu0 %v208
    %228 = vmatpush.bf16.msra.mxu0 %v207
    %229 = vmatpush.bf16.msra.mxu0 %v206
    %230 = vmatmul.bf16.gmra.mxu0 %v220
    %v231 = vpop.f32.mrf.mxu0
    %v232 = vadd.f32 0.0, %v231
    %v233 = vpop.f32.mrf.mxu0
    %234 = vdwg.mxu0
    %235 = vst [vmem:[%s7] sm:$0xff] %v232
    // Predicated region
    $region34: #{_kan_forward_impl.1} parent=1 // pred_check
      _
    $region35: #{_kan_forward_impl.1} parent=1 // pred_check_branch
      %237 = sbr.rel (0) target = $region37
    $region36: #{_kan_forward_impl.1} parent=1 // pred_region
      _
    $region37: #{_kan_forward_impl.1} parent=1 // pred_fallthru
      _
    // Predicated region
    $region38: #{_kan_forward_impl.1} parent=1 // pred_check
      _
    $region39: #{_kan_forward_impl.1} parent=1 // pred_check_branch
      %239 = sbr.rel (0) target = $region41
    $region40: #{_kan_forward_impl.1} parent=1 // pred_region
      _
    $region41: #{_kan_forward_impl.1} parent=1 // pred_fallthru
      _
    %240 = vsyncpa [#allocation3], 1

// kernel: _kan_forward_impl.1
$region0: #{_kan_forward_impl.1}
  #allocation0 [shape = 'u32[]', space=smem, size = 0x4, offset = 0x4, fixed_abs, tag = 'smem constant byte address 0x4 - core index']
  #allocation1 [shape = 'u32[72,128]{1,0:T(1,128)}', space=vmem, size = 0x9000, scoped, tag = 'internal scratch']
  %s0 = inlined_call_operand.vmem [shape: f32[8,4], index: 0, kind: input, shape index: {}]
  %s1 = inlined_call_operand.vmem [shape: f32[1,24], index: 1, kind: input, shape index: {}]
  %s2 = inlined_call_operand.vmem [shape: f32[3,24], index: 2, kind: input, shape index: {}]
  %s3 = inlined_call_operand.vmem [shape: bf16[24,16], index: 3, kind: input, shape index: {}]
  %s4 = inlined_call_operand.vmem [shape: f32[1,96], index: 4, kind: input, shape index: {}]
  %s5 = inlined_call_operand.vmem [shape: f32[3,96], index: 5, kind: input, shape index: {}]
  %s6 = inlined_call_operand.hbm [shape: bf16[96,128], index: 6, kind: input, shape index: {}]
  %s7 = inlined_call_operand.vmem [shape: f32[8,128], index: 7, kind: output, shape index: {}]
  %s8 = sld [smem:[#allocation0]]
  $region42: #{_kan_forward_impl.1} parent=0
    _
  %s10 = ssub.s32 1, %s8
  %s11 = scalar_select 0, %s10, %s8
  $region1: #{_kan_forward_impl.1} parent=0
    #allocation2 [shape = 'u8[24576]{0}', space=vmem, size = 0x6000, scoped, tag = 'input window, operand 6, single buffered']
    #allocation3 [shape = 's32[1]{0}', space=sflag, size = 0x4, scoped, tag = 'scoped memory for _kan_forward_impl.1']
    %12 = vsyncpa [#allocation3], 0
    // Predicated region
    $region2: #{_kan_forward_impl.1} parent=1 // pred_check
      _
    $region3: #{_kan_forward_impl.1} parent=1 // pred_check_branch
      %14 = sbr.rel (0) target = $region5
    $region4: #{_kan_forward_impl.1} parent=1 // pred_region
      _
    $region5: #{_kan_forward_impl.1} parent=1 // pred_fallthru
      _
    // Predicated region
    $region6: #{_kan_forward_impl.1} parent=1 // pred_check
      _
    $region7: #{_kan_forward_impl.1} parent=1 // pred_check_branch
      %16 = sbr.rel (0) target = $region9
    $region8: #{_kan_forward_impl.1} parent=1 // pred_region
      _
    $region9: #{_kan_forward_impl.1} parent=1 // pred_fallthru
      _
    // Predicated region
    $region10: #{_kan_forward_impl.1} parent=1 // pred_check
      _
    $region11: #{_kan_forward_impl.1} parent=1 // pred_check_branch
      %18 = sbr.rel (0) target = $region13
    $region12: #{_kan_forward_impl.1} parent=1 // pred_region
      _
    $region13: #{_kan_forward_impl.1} parent=1 // pred_fallthru
      _
    // Predicated region
    $region14: #{_kan_forward_impl.1} parent=1 // pred_check
      _
    $region15: #{_kan_forward_impl.1} parent=1 // pred_check_branch
      %20 = sbr.rel (0) target = $region17
    $region16: #{_kan_forward_impl.1} parent=1 // pred_region
      _
    $region17: #{_kan_forward_impl.1} parent=1 // pred_fallthru
      _
    // Predicated region
    $region18: #{_kan_forward_impl.1} parent=1 // pred_check
      _
    $region19: #{_kan_forward_impl.1} parent=1 // pred_check_branch
      %22 = sbr.rel (0) target = $region21
    $region20: #{_kan_forward_impl.1} parent=1 // pred_region
      _
    $region21: #{_kan_forward_impl.1} parent=1 // pred_fallthru
      _
    // Predicated region
    $region22: #{_kan_forward_impl.1} parent=1 // pred_check
      _
    $region23: #{_kan_forward_impl.1} parent=1 // pred_check_branch
      %24 = sbr.rel (0) target = $region25
    $region24: #{_kan_forward_impl.1} parent=1 // pred_region
      _
    $region25: #{_kan_forward_impl.1} parent=1 // pred_fallthru
      _
    // Predicated region
    $region26: #{_kan_forward_impl.1} parent=1 // pred_check
      _
    $region27: #{_kan_forward_impl.1} parent=1 // pred_check_branch
      %26 = sbr.rel (0) target = $region29
    $region28: #{_kan_forward_impl.1} parent=1 // pred_region
      %28 = vsyncadd [#allocation3], 0
      %s29 = sshll.u32 %s6, 4
      %s30 = int_to_ptr.hbm [resolvable:$true] %s29
      %s31 = sshll.u32 [#allocation2], 4
      %s32 = int_to_ptr.vmem [resolvable:$true] %s31
      %37 = dma.hbm_to_vmem [thread:$0]  %s30, 768, %s32, [#allocation3], 64, 64, 4
    $region29: #{_kan_forward_impl.1} parent=1 // pred_fallthru
      _
    // Predicated region
    $region30: #{_kan_forward_impl.1} parent=1 // pred_check
      _
    $region31: #{_kan_forward_impl.1} parent=1 // pred_check_branch
      %39 = sbr.rel (0) target = $region33
    $region32: #{_kan_forward_impl.1} parent=1 // pred_region
      %41 = dma.done [#allocation3], 768
    $region33: #{_kan_forward_impl.1} parent=1 // pred_fallthru
      _
    %v43 = vld [vmem:[%s0] sm:$0xff]
    %v44 = vld [vmem:[%s1] sm:$0x1]
    %v45 = vld [vmem:[%s2] sm:$0x7]
    %v46 = vld [vmem:[%s3] sm:$0xf]
    %v47 = vld [vmem:[%s3 + $0x4] sm:$0xf]
    %v48 = vld [vmem:[%s3 + $0x8] sm:$0xf]
    %50 = vrot.lane.b32.xlu0 %v43, 4
    %v51 = vpop.permute.xlu0 %50
    %53 = vrot.lane.b32.xlu0 %v43, 8
    %v54 = vpop.permute.xlu0 %53
    %56 = vrot.lane.b32.xlu0 %v43, 12
    %v57 = vpop.permute.xlu0 %56
    %59 = vrot.lane.b32.xlu0 %v43, 16
    %v60 = vpop.permute.xlu0 %59
    %62 = vrot.lane.b32.xlu0 %v43, 20
    %v63 = vpop.permute.xlu0 %62
    %vm65 = vcmask 31744
    %v66 = vsel %vm65, %v43, %v51
    %vm67 = vcmask 64512
    %v68 = vsel %vm67, %v66, %v54
    %vm69 = vcmask 97280
    %v70 = vsel %vm69, %v68, %v57
    %vm71 = vcmask 130048
    %v72 = vsel %vm71, %v70, %v60
    %vm73 = vcmask 162816
    %v74 = vsel %vm73, %v72, %v63
    %v76 = vperm.slane %v44, 0
    %v78 = vsub.f32 %v74, %v76
    %v79 = vperm.slane %v45, 0
    %v80 = vmul.f32 %v78, %v79
    %v81 = vmax.f32 %v80, 0.0
    %v82 = vmin.f32 %v81, 1.0
    %v83 = vperm.slane %v45, 1
    %v84 = vmul.f32 %v78, %v83
    %v85 = vmax.f32 %v84, 0.0
    %v86 = vmin.f32 %v85, 1.0
    %v87 = vmul.f32 %v82, %v86
    %v88 = vperm.slane %v45, 2
    %v89 = vmul.f32 %v78, %v88
    %v90 = vmax.f32 %v89, 0.0
    %v91 = vmin.f32 %v90, 1.0
    %v92 = vmul.f32 %v87, %v91
    %v93 = vpack.c.bf16 %v92, %v92
    %v97 = vunpack.c.l.b16 %v46
    %v98 = vunpack.c.l.b16 %v47
    %v99 = vunpack.c.l.b16 %v48
    %v100 = vpack.c.b16 %v98, %v97
    %v101 = vpack.c.b16 %v99, %v99
    %vm103 = vcmask 195584
    %v105 = vsel %vm103, %v93, 0
    %vm107 = vcmask 1043456
    %v109 = vsel %vm107, %v101, 0
    %111 = vmatpush.bf16.msra.mxu0 0
    %112 = vmatpush.bf16.msra.mxu0 0
    %113 = vmatpush.bf16.msra.mxu0 0
    %114 = vmatpush.bf16.msra.mxu0 0
    %115 = vmatpush.bf16.msra.mxu0 0
    %116 = vmatpush.bf16.msra.mxu0 0
    %117 = vmatpush.bf16.msra.mxu0 %v109
    %118 = vmatpush.bf16.msra.mxu0 %v100
    %119 = vmatmul.bf16.gmra.mxu0 %v105
    %v120 = vpop.f32.mrf.mxu0
    %v121 = vadd.f32 0.0, %v120
    %v122 = vpop.f32.mrf.mxu0
    %123 = vdwg.mxu0
    %v124 = vld [vmem:[%s4] sm:$0x1]
    %v125 = vld [vmem:[%s5] sm:$0x7]
    %v126 = vld [vmem:[#allocation2] sm:$0xf]
    %v127 = vld [vmem:[#allocation2 + $0x4] sm:$0xf]
    %v128 = vld [vmem:[#allocation2 + $0x8] sm:$0xf]
    %v129 = vld [vmem:[#allocation2 + $0xc] sm:$0xf]
    %v130 = vld [vmem:[#allocation2 + $0x10] sm:$0xf]
    %v131 = vld [vmem:[#allocation2 + $0x14] sm:$0xf]
    %v132 = vld [vmem:[#allocation2 + $0x18] sm:$0xf]
    %v133 = vld [vmem:[#allocation2 + $0x1c] sm:$0xf]
    %v134 = vld [vmem:[#allocation2 + $0x20] sm:$0xf]
    %v135 = vld [vmem:[#allocation2 + $0x24] sm:$0xf]
    %v136 = vld [vmem:[#allocation2 + $0x28] sm:$0xf]
    %v137 = vld [vmem:[#allocation2 + $0x2c] sm:$0xf]
    %139 = vrot.lane.b32.xlu0 %v121, 16
    %v140 = vpop.permute.xlu0 %139
    %142 = vrot.lane.b32.xlu0 %v121, 32
    %v143 = vpop.permute.xlu0 %142
    %145 = vrot.lane.b32.xlu0 %v121, 48
    %v146 = vpop.permute.xlu0 %145
    %148 = vrot.lane.b32.xlu0 %v121, 64
    %v149 = vpop.permute.xlu0 %148
    %151 = vrot.lane.b32.xlu0 %v121, 80
    %v152 = vpop.permute.xlu0 %151
    %v154 = vsel %vm71, %v121, %v140
    %vm155 = vcmask 261120
    %v156 = vsel %vm155, %v154, %v143
    %vm157 = vcmask 392192
    %v158 = vsel %vm157, %v156, %v146
    %vm159 = vcmask 523264
    %v160 = vsel %vm159, %v158, %v149
    %vm161 = vcmask 654336
    %v162 = vsel %vm161, %v160, %v152
    %v164 = vperm.slane %v124, 0
    %v166 = vsub.f32 %v162, %v164
    %v167 = vperm.slane %v125, 0
    %v168 = vmul.f32 %v166, %v167
    %v169 = vmax.f32 %v168, 0.0
    %v170 = vmin.f32 %v169, 1.0
    %v171 = vperm.slane %v125, 1
    %v172 = vmul.f32 %v166, %v171
    %v173 = vmax.f32 %v172, 0.0
    %v174 = vmin.f32 %v173, 1.0
    %v175 = vmul.f32 %v170, %v174
    %v176 = vperm.slane %v125, 2
    %v177 = vmul.f32 %v166, %v176
    %v178 = vmax.f32 %v177, 0.0
    %v179 = vmin.f32 %v178, 1.0
    %v180 = vmul.f32 %v175, %v179
    %v181 = vpack.c.bf16 %v180, %v180
    %v194 = vunpack.c.l.b16 %v126
    %v195 = vunpack.c.l.b16 %v127
    %v196 = vunpack.c.l.b16 %v128
    %v197 = vunpack.c.l.b16 %v129
    %v198 = vunpack.c.l.b16 %v130
    %v199 = vunpack.c.l.b16 %v131
    %v200 = vunpack.c.l.b16 %v132
    %v201 = vunpack.c.l.b16 %v133
    %v202 = vunpack.c.l.b16 %v134
    %v203 = vunpack.c.l.b16 %v135
    %v204 = vunpack.c.l.b16 %v136
    %v205 = vunpack.c.l.b16 %v137
    %v206 = vpack.c.b16 %v195, %v194
    %v207 = vpack.c.b16 %v197, %v196
    %v208 = vpack.c.b16 %v199, %v198
    %v209 = vpack.c.b16 %v201, %v200
    %v210 = vpack.c.b16 %v203, %v202
    %v211 = vpack.c.b16 %v205, %v204
    %vm218 = vcmask 785408
    %v220 = vsel %vm218, %v181, 0
    %222 = vmatpush.bf16.msra.mxu0 0
    %223 = vmatpush.bf16.msra.mxu0 0
    %224 = vmatpush.bf16.msra.mxu0 %v211
    %225 = vmatpush.bf16.msra.mxu0 %v210
    %226 = vmatpush.bf16.msra.mxu0 %v209
    %227 = vmatpush.bf16.msra.mxu0 %v208
    %228 = vmatpush.bf16.msra.mxu0 %v207
    %229 = vmatpush.bf16.msra.mxu0 %v206
    %230 = vmatmul.bf16.gmra.mxu0 %v220
    %v231 = vpop.f32.mrf.mxu0
    %v232 = vadd.f32 0.0, %v231
    %v233 = vpop.f32.mrf.mxu0
    %234 = vdwg.mxu0
    %235 = vst [vmem:[%s7] sm:$0xff] %v232
    // Predicated region
    $region34: #{_kan_forward_impl.1} parent=1 // pred_check
      _
    $region35: #{_kan_forward_impl.1} parent=1 // pred_check_branch
      %237 = sbr.rel (0) target = $region37
    $region36: #{_kan_forward_impl.1} parent=1 // pred_region
      _
    $region37: #{_kan_forward_impl.1} parent=1 // pred_fallthru
      _
    // Predicated region
    $region38: #{_kan_forward_impl.1} parent=1 // pred_check
      _
    $region39: #{_kan_forward_impl.1} parent=1 // pred_check_branch
      %239 = sbr.rel (0) target = $region41
    $region40: #{_kan_forward_impl.1} parent=1 // pred_region
      _
    $region41: #{_kan_forward_impl.1} parent=1 // pred_fallthru
      _
    %240 = vsyncpa [#allocation3], 1

</llo_original>
